<compile_context>
chip_gen: v5e
topology: v5e:2x2
jax: 0.10.0
libtpu: 0.0.40
codegen_flags: <defaults>
</compile_context>

<pallas_src>
import functools

import jax
import jax.numpy as jnp
from jax.experimental import pallas as pl
from jax.experimental.pallas import tpu as pltpu


def _round_up(x, m):
    return ((x + m - 1) // m) * m


def glp_mlp_kernel(x_ref, w1_ref, b1_ref, w2_ref, b2_ref, w3_ref, b3_ref,
                   o_ref, *, negative_slope, eps, mxu_dtype):
    """Fused MLP + L2-normalize for one row tile (weights resident in VMEM)."""
    x = x_ref[...]
    if x.dtype != mxu_dtype:
        x = x.astype(mxu_dtype)

    # hidden layer 1: Linear + LeakyReLU(0.2)   (MXU in mxu_dtype, f32 accum)
    h = jnp.dot(x, w1_ref[...], preferred_element_type=jnp.float32) + b1_ref[...]
    h = jnp.where(h >= 0.0, h, negative_slope * h)

    # hidden layer 2: Linear + LeakyReLU(0.2)
    h = jnp.dot(h.astype(mxu_dtype), w2_ref[...],
                preferred_element_type=jnp.float32) + b2_ref[...]
    h = jnp.where(h >= 0.0, h, negative_slope * h)

    # output layer: Linear (no activation)
    y = jnp.dot(h.astype(mxu_dtype), w3_ref[...],
                preferred_element_type=jnp.float32) + b3_ref[...]

    # F.normalize(y, p=2, dim=1, eps=1e-12) via squared-norm + rsqrt:
    # rsqrt(max(norm^2, eps^2)) == 1 / max(norm, eps)
    norm_sq = jnp.sum(y * y, axis=1, keepdims=True)
    inv = jax.lax.rsqrt(jnp.maximum(norm_sq, eps * eps))
    o_ref[...] = (y * inv).astype(o_ref.dtype)


def glp_forward(x, params, *, negative_slope=0.2, eps=1e-12, row_tile=8192,
                use_bf16=True, out_dtype=jnp.float32):
    """Row-tiled, pipelined Pallas forward.

    x: (N, C_in) float32
    params: dict with w1 (C_in,H1), b1 (1,H1), w2 (H1,H2), b2 (1,H2),
            w3 (H2,C_out), b3 (1,C_out)   (all float32)
    returns: (N, C_out) out_dtype, rows L2-normalized

    TODO(synk): `mask` (boolean row selection) produces dynamic shapes and is
    left to the caller; this implements the mask=None path.  The sparse
    adjacency `conv` method is not part of the MLP forward and is not
    implemented here.
    """
    n, c_in = x.shape
    c_out = params["w3"].shape[1]

    mxu_dtype = jnp.bfloat16 if use_bf16 else jnp.float32
    sublane = 16 if use_bf16 else 8  # bf16 packs 2 rows per sublane

    # Balanced row tiling: tm is a multiple of `sublane`, tiles are near-equal,
    # padding waste is < `sublane` rows per tile.  Ensure >= 4 grid steps when
    # N allows it so v7x's two TensorCores both get work (harmless elsewhere).
    row_tile = max(_round_up(int(row_tile), sublane), sublane)
    num_tiles = max(pl.cdiv(n, row_tile), min(4, pl.cdiv(n, sublane)))
    tm = _round_up(pl.cdiv(n, num_tiles), sublane)
    n_pad = num_tiles * tm

    # Streamed input: cast to the MXU dtype in HBM (halves input DMA for bf16).
    x_p = x.astype(mxu_dtype) if x.dtype != mxu_dtype else x
    if n_pad != n:
        x_p = jnp.pad(x_p, ((0, n_pad - n), (0, 0)))

    # Weights to MXU dtype; biases stay f32 (added to the f32 accumulator).
    w1 = params["w1"].astype(mxu_dtype)
    w2 = params["w2"].astype(mxu_dtype)
    w3 = params["w3"].astype(mxu_dtype)
    b1, b2, b3 = params["b1"], params["b2"], params["b3"]

    def const_spec(shape):
        # Whole-array block, same block every grid step -> stays VMEM-resident.
        return pl.BlockSpec(shape, lambda i: (0, 0))

    kernel = functools.partial(glp_mlp_kernel,
                               negative_slope=negative_slope, eps=eps,
                               mxu_dtype=mxu_dtype)

    out_padded = pl.pallas_call(
        kernel,
        out_shape=jax.ShapeDtypeStruct((n_pad, c_out), out_dtype),
        grid=(num_tiles,),
        in_specs=[
            pl.BlockSpec((tm, c_in), lambda i: (i, 0)),
            const_spec(w1.shape), const_spec(b1.shape),
            const_spec(w2.shape), const_spec(b2.shape),
            const_spec(w3.shape), const_spec(b3.shape),
        ],
        # Output block last dim == full array dim (c_out), so no zero padding
        # and no HBM write amplification.
        out_specs=pl.BlockSpec((tm, c_out), lambda i: (i, 0)),
        compiler_params=pltpu.CompilerParams(
            dimension_semantics=("parallel",)),
    )(x_p, w1, b1, w2, b2, w3, b3)

    return out_padded[:n, :]


def init_params(key, in_channels, hidden, out_channels):
    """Deterministic synthetic init (PyTorch-Linear-style uniform bounds)."""
    sizes = [in_channels] + list(hidden) + [out_channels]
    params = {}
    for i in range(len(sizes) - 1):
        key, kw, kb = jax.random.split(key, 3)
        fan_in, fan_out = sizes[i], sizes[i + 1]
        bound = 1.0 / jnp.sqrt(jnp.float32(fan_in))
        params[f"w{i+1}"] = jax.random.uniform(
            kw, (fan_in, fan_out), jnp.float32, -bound, bound)
        params[f"b{i+1}"] = jax.random.uniform(
            kb, (1, fan_out), jnp.float32, -bound, bound)
    return params


def glp_reference(x, params, negative_slope=0.2, eps=1e-12):
    """Pure-JAX f32 reference for correctness check."""
    h = x @ params["w1"] + params["b1"]
    h = jnp.where(h >= 0, h, negative_slope * h)
    h = h @ params["w2"] + params["b2"]
    h = jnp.where(h >= 0, h, negative_slope * h)
    y = h @ params["w3"] + params["b3"]
    norm = jnp.maximum(jnp.sqrt(jnp.sum(y * y, axis=1, keepdims=True)), eps)
    return y / norm


if __name__ == "__main__":
    # Shapes consistent with GLP(n, edges, in_channels=32, out_channels=16,
    # hidden_layers="64,32", k=2); forward takes (N, C_in).
    C_IN, HIDDEN, C_OUT = 32, (64, 32), 16

    key = jax.random.PRNGKey(0)
    key, kp = jax.random.split(key)
    params = init_params(kp, C_IN, HIDDEN, C_OUT)

    # Test 1: f32 MXU path, tiny batch (single grid step), tight tolerance.
    key, kx = jax.random.split(key)
    x_small = jax.random.normal(kx, (8, C_IN), dtype=jnp.float32)
    out_small = jax.block_until_ready(glp_forward(x_small, params,
                                                  use_bf16=False))
    ref_small = glp_reference(x_small, params)
    assert out_small.shape == (8, C_OUT), out_small.shape
    assert jnp.allclose(out_small, ref_small, atol=1e-5, rtol=1e-5), \
        float(jnp.max(jnp.abs(out_small - ref_small)))
    assert jnp.allclose(jnp.linalg.norm(out_small, axis=1), 1.0, atol=1e-5)

    # Test 2: f32 MXU path, multiple grid steps + ragged tail (exercises the
    # balanced row tiling / zero-row padding), tight tolerance.
    key, kx2 = jax.random.split(key)
    x_big = jax.random.normal(kx2, (300, C_IN), dtype=jnp.float32)
    out_big = jax.block_until_ready(glp_forward(x_big, params, row_tile=128,
                                                use_bf16=False))
    ref_big = glp_reference(x_big, params)
    assert out_big.shape == (300, C_OUT), out_big.shape
    assert jnp.allclose(out_big, ref_big, atol=1e-5, rtol=1e-5), \
        float(jnp.max(jnp.abs(out_big - ref_big)))
    assert jnp.allclose(jnp.linalg.norm(out_big, axis=1), 1.0, atol=1e-5)

    # Test 3: default bf16 MXU path (production config).  Relaxed tolerance vs.
    # the f32 reference (bf16 operand rounding), but unit norms must still hold
    # tightly since normalization is done in f32.
    out_bf16 = jax.block_until_ready(glp_forward(x_big, params))
    assert out_bf16.shape == (300, C_OUT), out_bf16.shape
    assert jnp.allclose(out_bf16, ref_big, atol=5e-2), \
        float(jnp.max(jnp.abs(out_bf16 - ref_big)))
    assert jnp.allclose(jnp.linalg.norm(out_bf16, axis=1), 1.0, atol=1e-4)

    print("KERNEL_OK")
</pallas_src>

<mosaic_0001>
module attributes {stable_mosaic.version = 11 : i64} {
  func.func @glp_mlp_kernel(%arg0: i32, %arg1: memref<8x32xf32, #tpu.memory_space<vmem>>, %arg2: memref<32x64xf32, #tpu.memory_space<vmem>>, %arg3: memref<1x64xf32, #tpu.memory_space<vmem>>, %arg4: memref<64x32xf32, #tpu.memory_space<vmem>>, %arg5: memref<1x32xf32, #tpu.memory_space<vmem>>, %arg6: memref<32x16xf32, #tpu.memory_space<vmem>>, %arg7: memref<1x16xf32, #tpu.memory_space<vmem>>, %arg8: memref<8x16xf32, #tpu.memory_space<vmem>>) attributes {dimension_semantics = [#tpu.dimension_semantics<parallel>], iteration_bounds = array<i64: 1>, scalar_prefetch = 0 : i64, scratch_operands = 0 : i64, tpu.core_type = #tpu.core_type<tc>, window_params = [{transform_indices = @transform_0, window_bounds = array<i64: 8, 32>}, {pipeline_mode = #tpu.pipeline_mode<synchronous>, transform_indices = @transform_1, window_bounds = array<i64: 32, 64>}, {pipeline_mode = #tpu.pipeline_mode<synchronous>, transform_indices = @transform_2, window_bounds = array<i64: 1, 64>}, {pipeline_mode = #tpu.pipeline_mode<synchronous>, transform_indices = @transform_3, window_bounds = array<i64: 64, 32>}, {pipeline_mode = #tpu.pipeline_mode<synchronous>, transform_indices = @transform_4, window_bounds = array<i64: 1, 32>}, {pipeline_mode = #tpu.pipeline_mode<synchronous>, transform_indices = @transform_5, window_bounds = array<i64: 32, 16>}, {pipeline_mode = #tpu.pipeline_mode<synchronous>, transform_indices = @transform_6, window_bounds = array<i64: 1, 16>}, {transform_indices = @transform_7, window_bounds = array<i64: 8, 16>}]} {
    %c0 = arith.constant 0 : index
    %c0_0 = arith.constant 0 : index
    %0 = vector.load %arg1[%c0, %c0_0] : memref<8x32xf32, #tpu.memory_space<vmem>>, vector<8x32xf32>
    %c0_1 = arith.constant 0 : index
    %c0_2 = arith.constant 0 : index
    %1 = vector.load %arg2[%c0_1, %c0_2] : memref<32x64xf32, #tpu.memory_space<vmem>>, vector<32x64xf32>
    %cst = arith.constant dense<0.000000e+00> : vector<8x64xf32>
    %2 = tpu.matmul %0, %1, %cst {dimension_numbers = #tpu.dot_dimension_numbers<[1], [0], [0], [1], [0, 0, 1, 1], [], []>} : vector<8x32xf32>, vector<32x64xf32>, vector<8x64xf32> -> vector<8x64xf32>
    %c0_3 = arith.constant 0 : index
    %c0_4 = arith.constant 0 : index
    %3 = vector.load %arg3[%c0_3, %c0_4] : memref<1x64xf32, #tpu.memory_space<vmem>>, vector<1x64xf32>
    %4 = vector.broadcast %3 : vector<1x64xf32> to vector<8x64xf32>
    %5 = arith.addf %2, %4 : vector<8x64xf32>
    %cst_5 = arith.constant 0.000000e+00 : f32
    %6 = vector.broadcast %cst_5 : f32 to vector<8x64xf32>
    %7 = arith.cmpf oge, %5, %6 : vector<8x64xf32>
    %cst_6 = arith.constant 2.000000e-01 : f32
    %8 = vector.broadcast %cst_6 : f32 to vector<8x64xf32>
    %9 = arith.mulf %8, %5 : vector<8x64xf32>
    %10 = arith.select %7, %5, %9 : vector<8x64xi1>, vector<8x64xf32>
    %c0_7 = arith.constant 0 : index
    %c0_8 = arith.constant 0 : index
    %11 = vector.load %arg4[%c0_7, %c0_8] : memref<64x32xf32, #tpu.memory_space<vmem>>, vector<64x32xf32>
    %cst_9 = arith.constant dense<0.000000e+00> : vector<8x32xf32>
    %12 = tpu.matmul %10, %11, %cst_9 {dimension_numbers = #tpu.dot_dimension_numbers<[1], [0], [0], [1], [0, 0, 1, 1], [], []>} : vector<8x64xf32>, vector<64x32xf32>, vector<8x32xf32> -> vector<8x32xf32>
    %c0_10 = arith.constant 0 : index
    %c0_11 = arith.constant 0 : index
    %13 = vector.load %arg5[%c0_10, %c0_11] : memref<1x32xf32, #tpu.memory_space<vmem>>, vector<1x32xf32>
    %14 = vector.broadcast %13 : vector<1x32xf32> to vector<8x32xf32>
    %15 = arith.addf %12, %14 : vector<8x32xf32>
    %cst_12 = arith.constant 0.000000e+00 : f32
    %16 = vector.broadcast %cst_12 : f32 to vector<8x32xf32>
    %17 = arith.cmpf oge, %15, %16 : vector<8x32xf32>
    %cst_13 = arith.constant 2.000000e-01 : f32
    %18 = vector.broadcast %cst_13 : f32 to vector<8x32xf32>
    %19 = arith.mulf %18, %15 : vector<8x32xf32>
    %20 = arith.select %17, %15, %19 : vector<8x32xi1>, vector<8x32xf32>
    %c0_14 = arith.constant 0 : index
    %c0_15 = arith.constant 0 : index
    %21 = vector.load %arg6[%c0_14, %c0_15] : memref<32x16xf32, #tpu.memory_space<vmem>>, vector<32x16xf32>
    %cst_16 = arith.constant dense<0.000000e+00> : vector<8x16xf32>
    %22 = tpu.matmul %20, %21, %cst_16 {dimension_numbers = #tpu.dot_dimension_numbers<[1], [0], [0], [1], [0, 0, 1, 1], [], []>} : vector<8x32xf32>, vector<32x16xf32>, vector<8x16xf32> -> vector<8x16xf32>
    %c0_17 = arith.constant 0 : index
    %c0_18 = arith.constant 0 : index
    %23 = vector.load %arg7[%c0_17, %c0_18] : memref<1x16xf32, #tpu.memory_space<vmem>>, vector<1x16xf32>
    %24 = vector.broadcast %23 : vector<1x16xf32> to vector<8x16xf32>
    %25 = arith.addf %22, %24 : vector<8x16xf32>
    %26 = arith.mulf %25, %25 : vector<8x16xf32>
    %cst_19 = arith.constant dense<0.000000e+00> : vector<8xf32>
    %27 = vector.multi_reduction <add>, %26, %cst_19 [1] : vector<8x16xf32> to vector<8xf32>
    %28 = vector.shape_cast %27 : vector<8xf32> to vector<8x1xf32>
    %cst_20 = arith.constant 1.000000e-24 : f32
    %29 = vector.broadcast %cst_20 : f32 to vector<8x1xf32>
    %30 = arith.maximumf %28, %29 : vector<8x1xf32>
    %31 = math.rsqrt %30 : vector<8x1xf32>
    %32 = vector.broadcast %31 : vector<8x1xf32> to vector<8x16xf32>
    %33 = arith.mulf %25, %32 : vector<8x16xf32>
    %c0_21 = arith.constant 0 : index
    %c0_22 = arith.constant 0 : index
    %34 = vector.load %arg8[%c0_21, %c0_22] : memref<8x16xf32, #tpu.memory_space<vmem>>, vector<8x16xf32>
    tpu.vector_store %arg8[%c0_21, %c0_22], %33 {strides = array<i32>} : memref<8x16xf32, #tpu.memory_space<vmem>>, vector<8x16xf32>,
    return
  }
  func.func @transform_0(%arg0: i32) -> (i32, i32) {
    %c0_i32 = arith.constant 0 : i32
    %c0_i32_0 = arith.constant 0 : i32
    return %arg0, %c0_i32 : i32, i32
  }
  func.func @transform_1(%arg0: i32) -> (i32, i32) {
    %c0_i32 = arith.constant 0 : i32
    %c0_i32_0 = arith.constant 0 : i32
    %c0_i32_1 = arith.constant 0 : i32
    return %c0_i32, %c0_i32_0 : i32, i32
  }
  func.func @transform_2(%arg0: i32) -> (i32, i32) {
    %c0_i32 = arith.constant 0 : i32
    %c0_i32_0 = arith.constant 0 : i32
    %c0_i32_1 = arith.constant 0 : i32
    return %c0_i32, %c0_i32_0 : i32, i32
  }
  func.func @transform_3(%arg0: i32) -> (i32, i32) {
    %c0_i32 = arith.constant 0 : i32
    %c0_i32_0 = arith.constant 0 : i32
    %c0_i32_1 = arith.constant 0 : i32
    return %c0_i32, %c0_i32_0 : i32, i32
  }
  func.func @transform_4(%arg0: i32) -> (i32, i32) {
    %c0_i32 = arith.constant 0 : i32
    %c0_i32_0 = arith.constant 0 : i32
    %c0_i32_1 = arith.constant 0 : i32
    return %c0_i32, %c0_i32_0 : i32, i32
  }
  func.func @transform_5(%arg0: i32) -> (i32, i32) {
    %c0_i32 = arith.constant 0 : i32
    %c0_i32_0 = arith.constant 0 : i32
    %c0_i32_1 = arith.constant 0 : i32
    return %c0_i32, %c0_i32_0 : i32, i32
  }
  func.func @transform_6(%arg0: i32) -> (i32, i32) {
    %c0_i32 = arith.constant 0 : i32
    %c0_i32_0 = arith.constant 0 : i32
    %c0_i32_1 = arith.constant 0 : i32
    return %c0_i32, %c0_i32_0 : i32, i32
  }
  func.func @transform_7(%arg0: i32) -> (i32, i32) {
    %c0_i32 = arith.constant 0 : i32
    %c0_i32_0 = arith.constant 0 : i32
    return %arg0, %c0_i32 : i32, i32
  }
}

</mosaic_0001>

<llo_original>
// kernel: tpu_custom_call.1
$region0: #{tpu_custom_call.1}
  #allocation0 [shape = 'u32[]', space=smem, size = 0x4, offset = 0x4, fixed_abs, tag = 'smem constant byte address 0x4 - core index']
  #allocation1 [shape = 'u32[72,128]{1,0:T(1,128)}', space=vmem, size = 0x9000, scoped, tag = 'internal scratch']
  %s0 = inlined_call_operand.vmem [shape: f32[8,32], index: 0, kind: input, shape index: {}]
  %s1 = inlined_call_operand.vmem [shape: f32[32,64], index: 1, kind: input, shape index: {}]
  %s2 = inlined_call_operand.vmem [shape: f32[1,64], index: 2, kind: input, shape index: {}]
  %s3 = inlined_call_operand.vmem [shape: f32[64,32], index: 3, kind: input, shape index: {}]
  %s4 = inlined_call_operand.vmem [shape: f32[1,32], index: 4, kind: input, shape index: {}]
  %s5 = inlined_call_operand.vmem [shape: f32[32,16], index: 5, kind: input, shape index: {}]
  %s6 = inlined_call_operand.vmem [shape: f32[1,16], index: 6, kind: input, shape index: {}]
  %s7 = inlined_call_operand.hbm [shape: f32[8,16], index: 7, kind: output, shape index: {}]
  %s8 = sld [smem:[#allocation0]]
  $region38: #{tpu_custom_call.1} parent=0
    _
  %s10 = ssub.s32 1, %s8
  %s11 = scalar_select 0, %s10, %s8
  $region1: #{tpu_custom_call.1} parent=0
    #allocation2 [shape = 'u8[4096]{0}', space=vmem, size = 0x1000, scoped, tag = 'output window, operand 0, single buffered']
    #allocation3 [shape = 's32[1]{0}', space=sflag, size = 0x4, scoped, tag = 'scoped memory for tpu_custom_call.1']
    %12 = vsyncpa [#allocation3], 0
    // Predicated region
    $region2: #{tpu_custom_call.1} parent=1 // pred_check
      _
    $region3: #{tpu_custom_call.1} parent=1 // pred_check_branch
      %14 = sbr.rel (0) target = $region5
    $region4: #{tpu_custom_call.1} parent=1 // pred_region
      _
    $region5: #{tpu_custom_call.1} parent=1 // pred_fallthru
      _
    // Predicated region
    $region6: #{tpu_custom_call.1} parent=1 // pred_check
      _
    $region7: #{tpu_custom_call.1} parent=1 // pred_check_branch
      %16 = sbr.rel (0) target = $region9
    $region8: #{tpu_custom_call.1} parent=1 // pred_region
      _
    $region9: #{tpu_custom_call.1} parent=1 // pred_fallthru
      _
    // Predicated region
    $region10: #{tpu_custom_call.1} parent=1 // pred_check
      _
    $region11: #{tpu_custom_call.1} parent=1 // pred_check_branch
      %18 = sbr.rel (0) target = $region13
    $region12: #{tpu_custom_call.1} parent=1 // pred_region
      _
    $region13: #{tpu_custom_call.1} parent=1 // pred_fallthru
      _
    // Predicated region
    $region14: #{tpu_custom_call.1} parent=1 // pred_check
      _
    $region15: #{tpu_custom_call.1} parent=1 // pred_check_branch
      %20 = sbr.rel (0) target = $region17
    $region16: #{tpu_custom_call.1} parent=1 // pred_region
      _
    $region17: #{tpu_custom_call.1} parent=1 // pred_fallthru
      _
    // Predicated region
    $region18: #{tpu_custom_call.1} parent=1 // pred_check
      _
    $region19: #{tpu_custom_call.1} parent=1 // pred_check_branch
      %22 = sbr.rel (0) target = $region21
    $region20: #{tpu_custom_call.1} parent=1 // pred_region
      _
    $region21: #{tpu_custom_call.1} parent=1 // pred_fallthru
      _
    // Predicated region
    $region22: #{tpu_custom_call.1} parent=1 // pred_check
      _
    $region23: #{tpu_custom_call.1} parent=1 // pred_check_branch
      %24 = sbr.rel (0) target = $region25
    $region24: #{tpu_custom_call.1} parent=1 // pred_region
      _
    $region25: #{tpu_custom_call.1} parent=1 // pred_fallthru
      _
    // Predicated region
    $region26: #{tpu_custom_call.1} parent=1 // pred_check
      _
    $region27: #{tpu_custom_call.1} parent=1 // pred_check_branch
      %26 = sbr.rel (0) target = $region29
    $region28: #{tpu_custom_call.1} parent=1 // pred_region
      _
    $region29: #{tpu_custom_call.1} parent=1 // pred_fallthru
      _
    %v27 = vld [vmem:[%s0] sm:$0xff]
    %v28 = vld [vmem:[%s1] sm:$0xff]
    %v29 = vld [vmem:[%s1 + $0x8] sm:$0xff]
    %v30 = vld [vmem:[%s1 + $0x10] sm:$0xff]
    %v31 = vld [vmem:[%s1 + $0x18] sm:$0xff]
    %v32 = vld [vmem:[%s2] sm:$0x1]
    %v34 = vperm.slane %v32, 0
    %vm36 = vcmask 261120
    %v38 = vsel %vm36, %v27, 0
    %40 = vmatpush.msra.mxu0 0.0
    %41 = vmatpush.msra.mxu0 0.0
    %42 = vmatpush.msra.mxu0 0.0
    %43 = vmatpush.msra.mxu0 0.0
    %44 = vmatpush.msra.mxu0 0.0
    %45 = vmatpush.msra.mxu0 0.0
    %46 = vmatpush.msra.mxu0 0.0
    %47 = vmatpush.msra.mxu0 0.0
    %48 = vmatpush.msra.mxu0 0.0
    %49 = vmatpush.msra.mxu0 0.0
    %50 = vmatpush.msra.mxu0 0.0
    %51 = vmatpush.msra.mxu0 0.0
    %52 = vmatpush.msra.mxu0 %v31
    %53 = vmatpush.msra.mxu0 %v30
    %54 = vmatpush.msra.mxu0 %v29
    %55 = vmatpush.msra.mxu0 %v28
    %56 = vmatmul.f32.gmra.mxu0 %v38
    %v57 = vpop.f32.mrf.mxu0
    %v58 = vadd.f32 %v34, %v57
    %59 = vdwg.mxu0
    %vm60 = vcmp.ge.f32.partialorder %v58, 0.0
    %v61 = vmul.f32 %v58, 0.2
    %v62 = vsel %vm60, %v58, %v61
    %v63 = vld [vmem:[%s3] sm:$0xff]
    %v64 = vld [vmem:[%s3 + $0x8] sm:$0xff]
    %v65 = vld [vmem:[%s3 + $0x10] sm:$0xff]
    %v66 = vld [vmem:[%s3 + $0x18] sm:$0xff]
    %v67 = vld [vmem:[%s3 + $0x20] sm:$0xff]
    %v68 = vld [vmem:[%s3 + $0x28] sm:$0xff]
    %v69 = vld [vmem:[%s3 + $0x30] sm:$0xff]
    %v70 = vld [vmem:[%s3 + $0x38] sm:$0xff]
    %v71 = vld [vmem:[%s4] sm:$0x1]
    %v73 = vperm.slane %v71, 0
    %vm75 = vcmask 523264
    %v77 = vsel %vm75, %v62, 0
    %79 = vmatpush.msra.mxu0 0.0
    %80 = vmatpush.msra.mxu0 0.0
    %81 = vmatpush.msra.mxu0 0.0
    %82 = vmatpush.msra.mxu0 0.0
    %83 = vmatpush.msra.mxu0 0.0
    %84 = vmatpush.msra.mxu0 0.0
    %85 = vmatpush.msra.mxu0 0.0
    %86 = vmatpush.msra.mxu0 0.0
    %87 = vmatpush.msra.mxu0 %v70
    %88 = vmatpush.msra.mxu0 %v69
    %89 = vmatpush.msra.mxu0 %v68
    %90 = vmatpush.msra.mxu0 %v67
    %91 = vmatpush.msra.mxu0 %v66
    %92 = vmatpush.msra.mxu0 %v65
    %93 = vmatpush.msra.mxu0 %v64
    %94 = vmatpush.msra.mxu0 %v63
    %95 = vmatmul.f32.gmra.mxu0 %v77
    %v96 = vpop.f32.mrf.mxu0
    %v97 = vadd.f32 %v73, %v96
    %98 = vdwg.mxu0
    %vm99 = vcmp.ge.f32.partialorder %v97, 0.0
    %v100 = vmul.f32 %v97, 0.2
    %v101 = vsel %vm99, %v97, %v100
    %v102 = vld [vmem:[%s5] sm:$0xff]
    %v103 = vld [vmem:[%s5 + $0x8] sm:$0xff]
    %v104 = vld [vmem:[%s5 + $0x10] sm:$0xff]
    %v105 = vld [vmem:[%s5 + $0x18] sm:$0xff]
    %v106 = vld [vmem:[%s6] sm:$0x1]
    %v108 = vperm.slane %v106, 0
    %v111 = vsel %vm36, %v101, 0
    %113 = vmatpush.msra.mxu0 0.0
    %114 = vmatpush.msra.mxu0 0.0
    %115 = vmatpush.msra.mxu0 0.0
    %116 = vmatpush.msra.mxu0 0.0
    %117 = vmatpush.msra.mxu0 0.0
    %118 = vmatpush.msra.mxu0 0.0
    %119 = vmatpush.msra.mxu0 0.0
    %120 = vmatpush.msra.mxu0 0.0
    %121 = vmatpush.msra.mxu0 0.0
    %122 = vmatpush.msra.mxu0 0.0
    %123 = vmatpush.msra.mxu0 0.0
    %124 = vmatpush.msra.mxu0 0.0
    %125 = vmatpush.msra.mxu0 %v105
    %126 = vmatpush.msra.mxu0 %v104
    %127 = vmatpush.msra.mxu0 %v103
    %128 = vmatpush.msra.mxu0 %v102
    %129 = vmatmul.f32.gmra.mxu0 %v111
    %v130 = vpop.f32.mrf.mxu0
    %v131 = vadd.f32 %v108, %v130
    %132 = vdwg.mxu0
    %v133 = vmul.f32 %v131, %v131
    %vm134 = vcmask 130048
    %v135 = vsel %vm134, %v133, 0.0
    %136 = vadd.xlane.f32.xlu0 %v135
    %v137 = vpop.xlane.xlu0 %136
    %v138 = vmax.f32 %v137, 1e-24
    %v139 = vrsqrt.pop %v138
    %v140 = vmul.f32 %v139, %v138
    %v141 = vmul.f32 %v140, %v139
    %v142 = vmul.f32 0.5, %v141
    %v143 = vsub.f32 1.5, %v142
    %v144 = vmul.f32 %v139, %v143
    %vm145 = vweird.f32 %v138
    %vm146 = vweird.f32 %v139
    %vm147 = vmor %vm145, %vm146
    %v148 = vsel %vm147, %v139, %v144
    %v149 = vmul.f32 %v131, %v148
    %150 = vst.msk [vmem:[#allocation2] sm:$0xff] %vm134, %v149
    // Predicated region
    $region30: #{tpu_custom_call.1} parent=1 // pred_check
      _
    $region31: #{tpu_custom_call.1} parent=1 // pred_check_branch
      %152 = sbr.rel (0) target = $region33
    $region32: #{tpu_custom_call.1} parent=1 // pred_region
      %154 = vsyncadd [#allocation3], 0
      %s156 = sshll.u32 [#allocation2], 4
      %s157 = int_to_ptr.vmem [resolvable:$true] %s156
      %s158 = sshll.u32 %s7, 4
      %s159 = int_to_ptr.hbm [resolvable:$true] %s158
      %161 = dma.vmem_to_hbm [thread:$0]  %s157, 128, %s159, [#allocation3]
    $region33: #{tpu_custom_call.1} parent=1 // pred_fallthru
      _
    // Predicated region
    $region34: #{tpu_custom_call.1} parent=1 // pred_check
      _
    $region35: #{tpu_custom_call.1} parent=1 // pred_check_branch
      %163 = sbr.rel (0) target = $region37
    $region36: #{tpu_custom_call.1} parent=1 // pred_region
      %165 = dma.done [#allocation3], 128
    $region37: #{tpu_custom_call.1} parent=1 // pred_fallthru
      _
    %166 = vsyncpa [#allocation3], 1

</llo_original>
